<compile_context>
chip_gen: v7x
topology: tpu7x:2x2x1
jax: 0.10.0
libtpu: 0.0.40
codegen_flags: <defaults>
</compile_context>

<pallas_src>
import math
import functools
import jax
import jax.numpy as jnp
from jax.experimental import pallas as pl
from jax.experimental.pallas import tpu as pltpu

_VMEM_LIMIT = 32 * 1024 * 1024


def _round_up(x, m):
    return ((x + m - 1) // m) * m


def _pick_tile(total, max_tile, unit):
    """Largest multiple of `unit` that divides `total` (a multiple of `unit`) and <= max_tile.
    Keeps 768-based dims un-padded instead of rounding up to a hard-coded tile."""
    n = total // unit
    best = 1
    for d in range(1, n + 1):
        if n % d == 0 and d * unit <= max_tile:
            best = d
    return best * unit


@functools.lru_cache(maxsize=1)
def _bf16_eup_available():
    """bf16 transcendentals help on v6e/v7x; v5e and older have no bf16 EUP -> keep f32."""
    try:
        kind = jax.devices()[0].device_kind.lower()
    except Exception:
        return False
    if "tpu" not in kind:
        return False
    return not any(("v%d" % n) in kind for n in (2, 3, 4, 5))


# ------------------------ tiled linear: act(x @ w + b) ------------------------

def _linear_kernel_1k(act):
    def kernel(x_ref, w_ref, b_ref, o_ref):
        y = jnp.dot(x_ref[...], w_ref[...], preferred_element_type=jnp.float32)
        y = y + b_ref[...].astype(jnp.float32)
        if act == "gelu":
            # TODO(synk): HF BERT uses exact erf-GELU; tanh approximation kept for guaranteed
            # Mosaic lowering (small numeric drift vs. the PyTorch reference).
            y = jax.nn.gelu(y, approximate=True)
        o_ref[...] = y.astype(o_ref.dtype)
    return kernel


def _linear_kernel_acc(act):
    def kernel(x_ref, w_ref, b_ref, o_ref, acc_ref):
        k = pl.program_id(2)

        @pl.when(k == 0)
        def _():
            acc_ref[...] = jnp.zeros_like(acc_ref)

        acc_ref[...] += jnp.dot(x_ref[...], w_ref[...],
                                preferred_element_type=jnp.float32)

        @pl.when(k == pl.num_programs(2) - 1)
        def _():
            y = acc_ref[...] + b_ref[...].astype(jnp.float32)
            if act == "gelu":
                y = jax.nn.gelu(y, approximate=True)
            o_ref[...] = y.astype(o_ref.dtype)
    return kernel


def linear_pallas(x, w, b, act=None, out_dtype=jnp.bfloat16,
                  max_tm=1024, max_tn=768, max_tk=768):
    """y = act(x @ w + b); x:[M,K] w:[K,N] b:[N] -> [M,N]; bf16 MXU operands, f32 accumulate."""
    M, K = x.shape
    Kw, N = w.shape
    assert Kw == K

    Kp = _round_up(K, 128)
    Np = _round_up(N, 128)
    tk = _pick_tile(Kp, max(max_tk, 128), 128)
    tn = _pick_tile(Np, max(max_tn, 128), 128)
    tm = min(_round_up(max_tm, 8), _round_up(M, 8))
    Mp = _round_up(M, tm)
    nk = Kp // tk

    xp = x.astype(jnp.bfloat16)
    wp = w.astype(jnp.bfloat16)
    if (Mp, Kp) != (M, K):
        xp = jnp.pad(xp, ((0, Mp - M), (0, Kp - K)))
    if (Kp, Np) != (K, N):
        wp = jnp.pad(wp, ((0, Kp - K), (0, Np - N)))
    bp = b.astype(jnp.float32)
    if Np != N:
        bp = jnp.pad(bp, (0, Np - N))
    bp = bp.reshape(1, Np)

    cost = pl.CostEstimate(
        flops=2 * Mp * Np * Kp,
        transcendentals=(Mp * Np if act == "gelu" else 0),
        bytes_accessed=(Mp * Kp + Kp * Np) * 2 + Np * 4
        + Mp * Np * jnp.dtype(out_dtype).itemsize)

    if nk == 1:   # K fits in one tile: no scratch accumulator, no pl.when
        out = pl.pallas_call(
            _linear_kernel_1k(act),
            out_shape=jax.ShapeDtypeStruct((Mp, Np), out_dtype),
            grid=(Mp // tm, Np // tn),
            in_specs=[pl.BlockSpec((tm, tk), lambda i, j: (i, 0)),
                      pl.BlockSpec((tk, tn), lambda i, j: (0, j)),
                      pl.BlockSpec((1, tn), lambda i, j: (0, j))],
            out_specs=pl.BlockSpec((tm, tn), lambda i, j: (i, j)),
            compiler_params=pltpu.CompilerParams(
                dimension_semantics=("parallel", "parallel"),
                vmem_limit_bytes=_VMEM_LIMIT),
            cost_estimate=cost,
        )(xp, wp, bp)
    else:
        out = pl.pallas_call(
            _linear_kernel_acc(act),
            out_shape=jax.ShapeDtypeStruct((Mp, Np), out_dtype),
            grid=(Mp // tm, Np // tn, nk),
            in_specs=[pl.BlockSpec((tm, tk), lambda i, j, k: (i, k)),
                      pl.BlockSpec((tk, tn), lambda i, j, k: (k, j)),
                      pl.BlockSpec((1, tn), lambda i, j, k: (0, j))],
            out_specs=pl.BlockSpec((tm, tn), lambda i, j, k: (i, j)),
            scratch_shapes=[pltpu.VMEM((tm, tn), jnp.float32)],
            compiler_params=pltpu.CompilerParams(
                dimension_semantics=("parallel", "parallel", "arbitrary"),
                vmem_limit_bytes=_VMEM_LIMIT),
            cost_estimate=cost,
        )(xp, wp, bp)

    if (Mp, Np) != (M, N):
        out = out[:M, :N]
    return out


# --------------- fused linear + residual + LayerNorm:  LN(res + x @ w + b) ---------------

def _linear_res_ln_kernel_1k(eps):
    def kernel(x_ref, w_ref, b_ref, r_ref, g_ref, bt_ref, o_ref):
        y = jnp.dot(x_ref[...], w_ref[...], preferred_element_type=jnp.float32)
        y = y + b_ref[...].astype(jnp.float32) + r_ref[...].astype(jnp.float32)
        mu = jnp.mean(y, axis=-1, keepdims=True)
        var = jnp.mean(jnp.square(y - mu), axis=-1, keepdims=True)
        y = (y - mu) * jax.lax.rsqrt(var + eps)
        y = y * g_ref[...].astype(jnp.float32) + bt_ref[...].astype(jnp.float32)
        o_ref[...] = y.astype(o_ref.dtype)
    return kernel


def _linear_res_ln_kernel_acc(eps):
    def kernel(x_ref, w_ref, b_ref, r_ref, g_ref, bt_ref, o_ref, acc_ref):
        k = pl.program_id(1)

        @pl.when(k == 0)
        def _():
            acc_ref[...] = jnp.zeros_like(acc_ref)

        acc_ref[...] += jnp.dot(x_ref[...], w_ref[...],
                                preferred_element_type=jnp.float32)

        @pl.when(k == pl.num_programs(1) - 1)
        def _():
            y = acc_ref[...] + b_ref[...].astype(jnp.float32) + r_ref[...].astype(jnp.float32)
            mu = jnp.mean(y, axis=-1, keepdims=True)
            var = jnp.mean(jnp.square(y - mu), axis=-1, keepdims=True)
            y = (y - mu) * jax.lax.rsqrt(var + eps)
            y = y * g_ref[...].astype(jnp.float32) + bt_ref[...].astype(jnp.float32)
            o_ref[...] = y.astype(o_ref.dtype)
    return kernel


def linear_res_ln_pallas(x, w, b, res, g, beta, eps=1e-12, out_dtype=jnp.bfloat16,
                         max_tm=1024, max_tk=768):
    """LayerNorm(res + x @ w + b) in one kernel.  Requires N % 128 == 0 so the full
    (un-padded) output row is resident for the LN reduction."""
    M, K = x.shape
    Kw, N = w.shape
    assert Kw == K and N % 128 == 0 and res.shape == (M, N)

    Kp = _round_up(K, 128)
    tk = _pick_tile(Kp, max(max_tk, 128), 128)
    tm = min(_round_up(max_tm, 8), _round_up(M, 8))
    Mp = _round_up(M, tm)
    nk = Kp // tk

    xp = x.astype(jnp.bfloat16)
    if (Mp, Kp) != (M, K):
        xp = jnp.pad(xp, ((0, Mp - M), (0, Kp - K)))
    wp = w.astype(jnp.bfloat16)
    if Kp != K:
        wp = jnp.pad(wp, ((0, Kp - K), (0, 0)))
    rp = res if Mp == M else jnp.pad(res, ((0, Mp - M), (0, 0)))
    bp = b.astype(jnp.float32).reshape(1, N)
    gp = g.astype(jnp.float32).reshape(1, N)
    btp = beta.astype(jnp.float32).reshape(1, N)

    cost = pl.CostEstimate(
        flops=2 * Mp * N * Kp + 8 * Mp * N,
        transcendentals=Mp,
        bytes_accessed=(Mp * Kp + Kp * N) * 2
        + Mp * N * (jnp.dtype(res.dtype).itemsize + jnp.dtype(out_dtype).itemsize))

    if nk == 1:
        out = pl.pallas_call(
            _linear_res_ln_kernel_1k(eps),
            out_shape=jax.ShapeDtypeStruct((Mp, N), out_dtype),
            grid=(Mp // tm,),
            in_specs=[pl.BlockSpec((tm, tk), lambda i: (i, 0)),
                      pl.BlockSpec((tk, N), lambda i: (0, 0)),
                      pl.BlockSpec((1, N), lambda i: (0, 0)),
                      pl.BlockSpec((tm, N), lambda i: (i, 0)),
                      pl.BlockSpec((1, N), lambda i: (0, 0)),
                      pl.BlockSpec((1, N), lambda i: (0, 0))],
            out_specs=pl.BlockSpec((tm, N), lambda i: (i, 0)),
            compiler_params=pltpu.CompilerParams(
                dimension_semantics=("parallel",),
                vmem_limit_bytes=_VMEM_LIMIT),
            cost_estimate=cost,
        )(xp, wp, bp, rp, gp, btp)
    else:
        out = pl.pallas_call(
            _linear_res_ln_kernel_acc(eps),
            out_shape=jax.ShapeDtypeStruct((Mp, N), out_dtype),
            grid=(Mp // tm, nk),
            in_specs=[pl.BlockSpec((tm, tk), lambda i, k: (i, k)),
                      pl.BlockSpec((tk, N), lambda i, k: (k, 0)),
                      pl.BlockSpec((1, N), lambda i, k: (0, 0)),
                      pl.BlockSpec((tm, N), lambda i, k: (i, 0)),
                      pl.BlockSpec((1, N), lambda i, k: (0, 0)),
                      pl.BlockSpec((1, N), lambda i, k: (0, 0))],
            out_specs=pl.BlockSpec((tm, N), lambda i, k: (i, 0)),
            scratch_shapes=[pltpu.VMEM((tm, N), jnp.float32)],
            compiler_params=pltpu.CompilerParams(
                dimension_semantics=("parallel", "arbitrary"),
                vmem_limit_bytes=_VMEM_LIMIT),
            cost_estimate=cost,
        )(xp, wp, bp, rp, gp, btp)

    if Mp != M:
        out = out[:M]
    return out


# ----------------- row-tiled standalone layernorm (embedding LN / fallback) -----------------

def _layernorm_kernel(eps, with_res):
    def kernel(*refs):
        if with_res:
            x_ref, r_ref, g_ref, b_ref, o_ref = refs
            x = x_ref[...].astype(jnp.float32) + r_ref[...].astype(jnp.float32)
        else:
            x_ref, g_ref, b_ref, o_ref = refs
            x = x_ref[...].astype(jnp.float32)
        mu = jnp.mean(x, axis=-1, keepdims=True)
        var = jnp.mean(jnp.square(x - mu), axis=-1, keepdims=True)
        y = (x - mu) * jax.lax.rsqrt(var + eps)
        y = y * g_ref[...].astype(jnp.float32) + b_ref[...].astype(jnp.float32)
        o_ref[...] = y.astype(o_ref.dtype)
    return kernel


def layernorm_pallas(x, g, b, res=None, eps=1e-12, out_dtype=jnp.bfloat16, max_tm=1024):
    M, H = x.shape
    tm = min(_round_up(max_tm, 8), _round_up(M, 8))
    Mp = _round_up(M, tm)

    xs = [x] if res is None else [x, res]
    if Mp != M:
        xs = [jnp.pad(t, ((0, Mp - M), (0, 0))) for t in xs]

    row_spec = pl.BlockSpec((tm, H), lambda i: (i, 0))
    vec_spec = pl.BlockSpec((1, H), lambda i: (0, 0))
    out = pl.pallas_call(
        _layernorm_kernel(eps, res is not None),
        out_shape=jax.ShapeDtypeStruct((Mp, H), out_dtype),
        grid=(Mp // tm,),
        in_specs=[row_spec] * len(xs) + [vec_spec, vec_spec],
        out_specs=row_spec,
        compiler_params=pltpu.CompilerParams(
            dimension_semantics=("parallel",),
            vmem_limit_bytes=_VMEM_LIMIT),
    )(*xs, g.reshape(1, H).astype(jnp.float32), b.reshape(1, H).astype(jnp.float32))
    if Mp != M:
        out = out[:M]
    return out


# ------------------------------ multi-head attention ------------------------------

def _attn_kernel(use_bf16_exp):
    def kernel(q_ref, k_ref, v_ref, o_ref):
        q = q_ref[...]
        k = k_ref[...]
        v = v_ref[...]
        # 1/sqrt(dh) is pre-folded into the Q projection weights at init.
        s = jnp.einsum("hqd,hkd->hqk", q, k, preferred_element_type=jnp.float32)
        m = jnp.max(s, axis=-1, keepdims=True)
        if use_bf16_exp:
            p = jnp.exp((s - m).astype(jnp.bfloat16))      # bf16 EUP (v6e/v7x)
            l = jnp.sum(p, axis=-1, keepdims=True, dtype=jnp.float32)
            pv = p
        else:
            p = jnp.exp(s - m)                             # f32 on v5e and older
            l = jnp.sum(p, axis=-1, keepdims=True)
            pv = p.astype(v.dtype)
        o = jnp.einsum("hqk,hkd->hqd", pv, v, preferred_element_type=jnp.float32)
        o_ref[...] = (o * pl.reciprocal(l, approx=True)).astype(o_ref.dtype)
    return kernel


def attention_pallas(q, k, v, heads_per_block=8, vmem_budget=24 * 1024 * 1024):
    """softmax(q k^T) v (scale folded into q's projection); q,k,v: [B*heads, S, dh]."""
    # TODO(synk): for long sequences this should be a flash-style KV-tiled online-softmax
    # kernel; holding the full SxS scores per block is fine for short/medium S.
    BH, S, dh = q.shape
    itemsize = jnp.dtype(q.dtype).itemsize
    per_head = S * S * 6 + 8 * S * dh * itemsize   # f32 scores + bf16 probs + 2x-buffered q/k/v/o
    cap = max(1, vmem_budget // max(per_head, 1))
    hb_target = max(1, min(heads_per_block, BH, cap))
    divs = [d for d in range(1, BH + 1) if BH % d == 0 and d <= hb_target]
    pref = [d for d in divs if BH // d >= 2]       # keep >=2 grid blocks (megacore / dual TC)
    hb = max(pref) if pref else max(divs)

    spec = pl.BlockSpec((hb, S, dh), lambda i: (i, 0, 0))
    cost = pl.CostEstimate(flops=4 * BH * S * S * dh,
                           transcendentals=BH * S * S,
                           bytes_accessed=4 * BH * S * dh * itemsize)
    return pl.pallas_call(
        _attn_kernel(use_bf16_exp=_bf16_eup_available()),
        out_shape=jax.ShapeDtypeStruct((BH, S, dh), q.dtype),
        grid=(BH // hb,),
        in_specs=[spec, spec, spec],
        out_specs=spec,
        compiler_params=pltpu.CompilerParams(
            dimension_semantics=("parallel",),
            vmem_limit_bytes=_VMEM_LIMIT),
        cost_estimate=cost,
    )(q, k, v)


# ------------------------- Synthetic BERT-like encoder ---------------------

def init_params(key, *, vocab, hidden, n_layers, n_heads, ffn, max_pos,
                type_vocab, out_size):
    assert hidden % n_heads == 0
    q_scale = 1.0 / math.sqrt(hidden // n_heads)

    def nrm(k, shape):
        return 0.02 * jax.random.normal(k, shape, jnp.float32)

    keys = iter(jax.random.split(key, 8 + n_layers * 8))
    params = {
        "word_emb": nrm(next(keys), (vocab, hidden)),
        "pos_emb": nrm(next(keys), (max_pos, hidden)),
        "type_emb": nrm(next(keys), (type_vocab, hidden)),
        "emb_ln_g": jnp.ones((hidden,), jnp.float32),
        "emb_ln_b": jnp.zeros((hidden,), jnp.float32),
        "layers": [],
        # out_fn = nn.Linear(emb_size, out_size): stays a plain jnp.dot (too small to kernel-ize)
        "w_out": nrm(next(keys), (hidden, out_size)),
        "b_out": jnp.zeros((out_size,), jnp.float32),
        "n_heads": n_heads,
        "out_size": out_size,
    }
    for _ in range(n_layers):
        # 1/sqrt(dh) folded into the Q projection (one-time constant fold; Q bias is zero).
        wq = (nrm(next(keys), (hidden, hidden)) * q_scale).astype(jnp.bfloat16)
        wk = nrm(next(keys), (hidden, hidden)).astype(jnp.bfloat16)
        wv = nrm(next(keys), (hidden, hidden)).astype(jnp.bfloat16)
        lyr = {
            "w_qkv": jnp.concatenate([wq, wk, wv], axis=1),   # fused [H, 3H] projection
            "b_qkv": jnp.zeros((3 * hidden,), jnp.float32),
            "wo": nrm(next(keys), (hidden, hidden)).astype(jnp.bfloat16),
            "bo": jnp.zeros((hidden,), jnp.float32),
            "ln1_g": jnp.ones((hidden,), jnp.float32), "ln1_b": jnp.zeros((hidden,), jnp.float32),
            "w1": nrm(next(keys), (hidden, ffn)).astype(jnp.bfloat16),
            "b1": jnp.zeros((ffn,), jnp.float32),
            "w2": nrm(next(keys), (ffn, hidden)).astype(jnp.bfloat16),
            "b2": jnp.zeros((hidden,), jnp.float32),
            "ln2_g": jnp.ones((hidden,), jnp.float32), "ln2_b": jnp.zeros((hidden,), jnp.float32),
        }
        params["layers"].append(lyr)
    return params


def encoder_forward(params, inp, seg):
    """Returns last hidden state [B, S, H] (== encoder(inp, token_type_ids=seg)[0])."""
    B, S = inp.shape
    H = params["word_emb"].shape[1]
    nh = params["n_heads"]
    dh = H // nh

    x = (params["word_emb"][inp]
         + params["pos_emb"][jnp.arange(S)][None, :, :]
         + params["type_emb"][seg]).reshape(B * S, H)
    x = layernorm_pallas(x, params["emb_ln_g"], params["emb_ln_b"])   # -> bf16 [B*S, H]

    # fuse residual+LN into the WO / W2 epilogue when the full H row can be kept resident
    fuse_ln = (H % 128 == 0) and (H <= 2048)

    # TODO(synk): head split/merge stays as XLA reshapes/transposes (extra [B,S,H] HBM round
    # trips); emitting head-major QKV straight from the projection kernel is future work.
    def split_heads(t):
        return t.reshape(B, S, nh, dh).transpose(0, 2, 1, 3).reshape(B * nh, S, dh)

    def merge_heads(t):
        return t.reshape(B, nh, S, dh).transpose(0, 2, 1, 3).reshape(B * S, H)

    for lyr in params["layers"]:
        qkv = linear_pallas(x, lyr["w_qkv"], lyr["b_qkv"])            # [B*S, 3H]
        q, k, v = qkv[:, :H], qkv[:, H:2 * H], qkv[:, 2 * H:]
        a = attention_pallas(split_heads(q), split_heads(k), split_heads(v))
        a = merge_heads(a)
        if fuse_ln:
            x = linear_res_ln_pallas(a, lyr["wo"], lyr["bo"], x,
                                     lyr["ln1_g"], lyr["ln1_b"])      # LN(x + WO(a))
            h = linear_pallas(x, lyr["w1"], lyr["b1"], act="gelu")
            x = linear_res_ln_pallas(h, lyr["w2"], lyr["b2"], x,
                                     lyr["ln2_g"], lyr["ln2_b"])      # LN(x + W2(h))
        else:
            a = linear_pallas(a, lyr["wo"], lyr["bo"])
            x = layernorm_pallas(a, lyr["ln1_g"], lyr["ln1_b"], res=x)
            h = linear_pallas(x, lyr["w1"], lyr["b1"], act="gelu")
            h = linear_pallas(h, lyr["w2"], lyr["b2"])
            x = layernorm_pallas(h, lyr["ln2_g"], lyr["ln2_b"], res=x)
    return x.reshape(B, S, H)


# ---------------------------- MutiLabelModel.forward ------------------------

def muti_label_forward(params, inp, seg, n_sep):
    """
    embs = encoder(inp, token_type_ids=seg)[0]                      # [B, S, H]
    outputs = embs[0, (inp == 102).nonzero()[:, 1], :]              # gather SEP columns, batch 0
    outputs = out_fn(outputs).view(-1, out_size)
    """
    embs = encoder_forward(params, inp, seg)
    # torch.nonzero on [B,S] is row-major -> [:, 1] are the column indices of every SEP.
    # n_sep is the (static) number of SEP tokens present in `inp`.
    sep_cols = jnp.nonzero(inp == 102, size=n_sep)[1]
    gathered = embs[0, sep_cols, :].astype(jnp.float32)              # [n_sep, H]
    # classifier head: [n_sep, H] @ [H, 6] is launch-overhead territory -> plain XLA dot.
    out = gathered @ params["w_out"] + params["b_out"]
    return out.reshape(-1, params["out_size"])


# ----------------------------------- main -----------------------------------

if __name__ == "__main__":
    B, S = 2, 8
    HIDDEN, N_HEADS, N_LAYERS, FFN = 128, 2, 2, 256
    VOCAB, MAX_POS, TYPE_VOCAB, OUT_SIZE = 256, 16, 2, 6

    key = jax.random.PRNGKey(0)
    kp, ki, k1, k2, k3, k4 = jax.random.split(key, 6)

    # --- small numerical self-checks exercising the multi-K accumulator kernel paths ---
    xt = jax.random.normal(k1, (16, 256), jnp.float32)
    wt = jax.random.normal(k2, (256, 128), jnp.float32) * 0.05
    bt = jax.random.normal(k3, (128,), jnp.float32) * 0.05
    rt = jax.random.normal(k4, (16, 128), jnp.float32)

    ref_mm = (xt.astype(jnp.bfloat16).astype(jnp.float32)
              @ wt.astype(jnp.bfloat16).astype(jnp.float32) + bt)
    y_mm = linear_pallas(xt, wt, bt, out_dtype=jnp.float32, max_tk=128)   # forces nk=2
    assert jnp.allclose(y_mm, ref_mm, atol=5e-2, rtol=5e-2), "linear_pallas mismatch"

    pre = ref_mm + rt
    mu = pre.mean(-1, keepdims=True)
    var = ((pre - mu) ** 2).mean(-1, keepdims=True)
    ref_ln = (pre - mu) / jnp.sqrt(var + 1e-12)
    y_ln = linear_res_ln_pallas(xt, wt, bt, rt, jnp.ones((128,)), jnp.zeros((128,)),
                                out_dtype=jnp.float32, max_tk=128)        # forces nk=2
    assert jnp.allclose(y_ln, ref_ln, atol=5e-2, rtol=5e-2), "linear_res_ln_pallas mismatch"

    # --- MutiLabelModel forward at small shapes ---
    params = init_params(kp, vocab=VOCAB, hidden=HIDDEN, n_layers=N_LAYERS,
                         n_heads=N_HEADS, ffn=FFN, max_pos=MAX_POS,
                         type_vocab=TYPE_VOCAB, out_size=OUT_SIZE)

    # token ids: random body, CLS(101) at position 0, SEP(102) at the last position of each row
    inp = jax.random.randint(ki, (B, S), 3, 100, dtype=jnp.int32)
    inp = inp.at[:, 0].set(101).at[:, -1].set(102)
    seg = jnp.concatenate([jnp.zeros((B, S // 2), jnp.int32),
                           jnp.ones((B, S // 2), jnp.int32)], axis=1)
    n_sep = B  # exactly one SEP per row by construction

    out = muti_label_forward(params, inp, seg, n_sep)
    out = jax.block_until_ready(out)
    assert out.shape == (n_sep, OUT_SIZE), out.shape
    print("KERNEL_OK")
</pallas_src>

<mosaic_0001>
module attributes {stable_mosaic.version = 11 : i64} {
  func.func @kernel(%arg0: i32, %arg1: i32, %arg2: i32, %arg3: memref<16x128xbf16, #tpu.memory_space<vmem>>, %arg4: memref<128x128xbf16, #tpu.memory_space<vmem>>, %arg5: memref<1x128xf32, #tpu.memory_space<vmem>>, %arg6: memref<16x128xf32, #tpu.memory_space<vmem>>, %arg7: memref<16x128xf32, #tpu.memory_space<vmem>>) attributes {dimension_semantics = [#tpu.dimension_semantics<parallel>, #tpu.dimension_semantics<parallel>, #tpu.dimension_semantics<arbitrary>], iteration_bounds = array<i64: 1, 1, 2>, scalar_prefetch = 0 : i64, scratch_operands = 1 : i64, tpu.core_type = #tpu.core_type<tc>, window_params = [{transform_indices = @transform_0, window_bounds = array<i64: 16, 128>}, {transform_indices = @transform_1, window_bounds = array<i64: 128, 128>}, {transform_indices = @transform_2, window_bounds = array<i64: 1, 128>}, {transform_indices = @transform_3, window_bounds = array<i64: 16, 128>}]} {
    %c0_i32 = arith.constant 0 : i32
    %0 = arith.cmpi eq, %arg2, %c0_i32 : i32
    %1 = arith.extui %0 : i1 to i32
    %c0_i32_0 = arith.constant 0 : i32
    %2 = arith.cmpi ne, %1, %c0_i32_0 : i32
    scf.if %2 {
      %cst_9 = arith.constant 0.000000e+00 : f32
      %12 = vector.broadcast %cst_9 : f32 to vector<16x128xf32>
      %c0_10 = arith.constant 0 : index
      %c0_11 = arith.constant 0 : index
      %13 = vector.load %arg7[%c0_10, %c0_11] : memref<16x128xf32, #tpu.memory_space<vmem>>, vector<16x128xf32>
      tpu.vector_store %arg7[%c0_10, %c0_11], %12 {strides = array<i32>} : memref<16x128xf32, #tpu.memory_space<vmem>>, vector<16x128xf32>,
    } else {
    }
    %c0 = arith.constant 0 : index
    %c0_1 = arith.constant 0 : index
    %3 = vector.load %arg7[%c0, %c0_1] : memref<16x128xf32, #tpu.memory_space<vmem>>, vector<16x128xf32>
    %c0_2 = arith.constant 0 : index
    %c0_3 = arith.constant 0 : index
    %4 = vector.load %arg3[%c0_2, %c0_3] : memref<16x128xbf16, #tpu.memory_space<vmem>>, vector<16x128xbf16>
    %c0_4 = arith.constant 0 : index
    %c0_5 = arith.constant 0 : index
    %5 = vector.load %arg4[%c0_4, %c0_5] : memref<128x128xbf16, #tpu.memory_space<vmem>>, vector<128x128xbf16>
    %cst = arith.constant dense<0.000000e+00> : vector<16x128xf32>
    %6 = tpu.matmul %4, %5, %cst {dimension_numbers = #tpu.dot_dimension_numbers<[1], [0], [0], [1], [0, 0, 1, 1], [], []>} : vector<16x128xbf16>, vector<128x128xbf16>, vector<16x128xf32> -> vector<16x128xf32>
    %7 = arith.addf %3, %6 : vector<16x128xf32>
    %c0_6 = arith.constant 0 : index
    %c0_7 = arith.constant 0 : index
    %8 = vector.load %arg7[%c0_6, %c0_7] : memref<16x128xf32, #tpu.memory_space<vmem>>, vector<16x128xf32>
    tpu.vector_store %arg7[%c0_6, %c0_7], %7 {strides = array<i32>} : memref<16x128xf32, #tpu.memory_space<vmem>>, vector<16x128xf32>,
    %c1_i32 = arith.constant 1 : i32
    %9 = arith.cmpi eq, %arg2, %c1_i32 : i32
    %10 = arith.extui %9 : i1 to i32
    %c0_i32_8 = arith.constant 0 : i32
    %11 = arith.cmpi ne, %10, %c0_i32_8 : i32
    scf.if %11 {
      %c0_9 = arith.constant 0 : index
      %c0_10 = arith.constant 0 : index
      %12 = vector.load %arg7[%c0_9, %c0_10] : memref<16x128xf32, #tpu.memory_space<vmem>>, vector<16x128xf32>
      %c0_11 = arith.constant 0 : index
      %c0_12 = arith.constant 0 : index
      %13 = vector.load %arg5[%c0_11, %c0_12] : memref<1x128xf32, #tpu.memory_space<vmem>>, vector<1x128xf32>
      %14 = vector.broadcast %13 : vector<1x128xf32> to vector<16x128xf32>
      %15 = arith.addf %12, %14 : vector<16x128xf32>
      %c0_13 = arith.constant 0 : index
      %c0_14 = arith.constant 0 : index
      %16 = vector.load %arg6[%c0_13, %c0_14] : memref<16x128xf32, #tpu.memory_space<vmem>>, vector<16x128xf32>
      tpu.vector_store %arg6[%c0_13, %c0_14], %15 {strides = array<i32>} : memref<16x128xf32, #tpu.memory_space<vmem>>, vector<16x128xf32>,
    } else {
    }
    return
  }
  func.func @transform_0(%arg0: i32, %arg1: i32, %arg2: i32) -> (i32, i32) {
    %c0_i32 = arith.constant 0 : i32
    return %arg0, %arg2 : i32, i32
  }
  func.func @transform_1(%arg0: i32, %arg1: i32, %arg2: i32) -> (i32, i32) {
    %c0_i32 = arith.constant 0 : i32
    return %arg2, %arg1 : i32, i32
  }
  func.func @transform_2(%arg0: i32, %arg1: i32, %arg2: i32) -> (i32, i32) {
    %c0_i32 = arith.constant 0 : i32
    %c0_i32_0 = arith.constant 0 : i32
    return %c0_i32, %arg1 : i32, i32
  }
  func.func @transform_3(%arg0: i32, %arg1: i32, %arg2: i32) -> (i32, i32) {
    %c0_i32 = arith.constant 0 : i32
    return %arg0, %arg1 : i32, i32
  }
}

</mosaic_0001>

<llo_original>
// kernel: tpu_custom_call.1
$region0: #{tpu_custom_call.1}
  #allocation0 [shape = 'u32[]', space=smem, size = 0x4, offset = 0x4, fixed_abs, tag = 'smem constant byte address 0x4 - core index']
  #allocation1 [shape = 'u32[144,128]{1,0:T(1,128)}', space=vmem, size = 0x12000, scoped, tag = 'internal scratch']
  #allocation2 [shape = 'f32[16,128]{1,0:T(8,128)}', space=vmem, size = 0x2000, scoped, tag = 'scratch operand']
  %s0 = inlined_call_operand.hbm [shape: bf16[16,256], index: 0, kind: input, shape index: {}]
  %s1 = inlined_call_operand.hbm [shape: bf16[256,128], index: 1, kind: input, shape index: {}]
  %s2 = inlined_call_operand.vmem [shape: f32[1,128], index: 2, kind: input, shape index: {}]
  %s3 = inlined_call_operand.hbm [shape: f32[16,128], index: 3, kind: output, shape index: {}]
  %s4 = sld [smem:[#allocation0]]
  $region61: #{tpu_custom_call.1} parent=0
    _
  %s6 = ssub.s32 1, %s4
  %s7 = scalar_select 0, %s6, %s4
  $region1: #{tpu_custom_call.1} parent=0
    #allocation3 [shape = 'u8[8192]{0}', space=vmem, size = 0x2000, scoped, tag = 'input window, operand 0']
    #allocation4 [shape = 's32[2]{0}', space=sflag, size = 0x8, scoped, tag = 'scoped memory for tpu_custom_call.1']
    #allocation5 [shape = 's32[2]{0}', space=sflag, size = 0x8, scoped, tag = 'scoped memory for tpu_custom_call.1']
    #allocation6 [shape = 'u8[65536]{0}', space=vmem, size = 0x10000, scoped, tag = 'input window, operand 1']
    #allocation7 [shape = 's32[2]{0}', space=sflag, size = 0x8, scoped, tag = 'scoped memory for tpu_custom_call.1']
    #allocation8 [shape = 'u8[8192]{0}', space=vmem, size = 0x2000, scoped, tag = 'output window, operand 0, single buffered']
    %8 = vsyncpa [#allocation4], 0
    %s9 = scalar_lea.sflag [#allocation4], 1
    %10 = vsyncpa %s9, 0
    %11 = vsyncpa [#allocation7], 0
    %s12 = scalar_lea.sflag [#allocation7], 1
    %13 = vsyncpa %s12, 0
    %14 = vsyncpa [#allocation5], 0
    loop: start=0, step=1, limit=4
    $region2: #{tpu_custom_call.1} parent=1 // loop_pre_header
      _
    $region3: #{tpu_custom_call.1} parent=1 // loop_header
      %s16 = sphi 0, %s20
      %p17 = scmp.ge.s32.totalorder %s16, 4
      %s23 = sphi 0, %s42
      %s24 = sphi 0, %s38
      %s25 = sphi 0, %s34
      %s26 = sphi 0, %s23
      %s27 = sphi 0, %s24
      %s28 = sphi 0, %s25
      %s29 = sphi 0, %s26
      %s30 = sphi 0, %s27
      %s31 = sphi 0, %s28
      %s47 = sphi 0, %s49
      %s50 = sphi 0, %s47
      %s51 = sphi 0, %s50
      %s67 = sphi 0, %s51
      %s75 = sphi 0, %s77
      %s78 = sphi 0, %s75
      %s79 = sphi 0, %s78
      %s95 = sphi 0, %s79
      %s101 = sphi 0, %s103
      %s104 = sphi 0, %s101
      %s105 = sphi 0, %s104
      %s121 = sphi 0, %s105
      %s129 = sphi 0, %s131
      %s132 = sphi 0, %s129
      %s133 = sphi 0, %s132
      %s149 = sphi 0, %s133
    $region4: #{tpu_custom_call.1} parent=1 // loop_header_branch
      %19 = sbr.rel (%p17) target = $region8
    $region5: #{tpu_custom_call.1} parent=1 // loop_body
      %s21 = ssub.s32 %s16, 1
      %s22 = ssub.s32 %s16, 2
      %s32 = sadd.s32 1, %s25
      %p33 = scmp.ge.s32.totalorder %s32, 2
      %s34 = scalar_select %p33, 0, %s32
      %s35 = sadd.s32 1, %s24
      %s36 = scalar_select %p33, %s35, %s24
      %p37 = scmp.ge.s32.totalorder %s36, 1
      %s38 = scalar_select %p37, 0, %s36
      %s39 = sadd.s32 1, %s23
      %s40 = scalar_select %p37, %s39, %s23
      %p41 = scmp.ge.s32.totalorder %s40, 1
      %s42 = scalar_select %p41, 0, %s40
      %s43 = ssub.s32 %s23, %s42
      %s44 = ssub.s32 %s25, %s34
      %s45 = sor.u32 %s43, %s44
      %p46 = scmp.eq.s32.totalorder %s45, 0
      %s48 = sadd.s32 %s47, 1
      %s49 = scalar_select %p46, %s47, %s48
      %p52 = pneg %p46
      %p53 = scmp.eq.s32.totalorder %s16, 1
      %p54 = por %p52, %p53
      %p55 = scmp.ne.s32.totalorder %s47, %s50
      %p56 = scmp.eq.s32.totalorder %s16, 0
      %p57 = por %p55, %p56
      %p58 = scmp.ne.s32.totalorder %s47, %s50
      %p59 = scmp.eq.s32.totalorder %s21, 1
      %p60 = por %p58, %p59
      %p61 = scmp.ne.s32.totalorder %s50, %s51
      %p62 = scmp.eq.s32.totalorder %s21, 0
      %p63 = por %p61, %p62
      %p64 = scmp.ne.s32.totalorder %s50, %s51
      %p65 = scmp.eq.s32.totalorder %s22, 1
      %p66 = por %p64, %p65
      %p68 = scmp.ne.s32.totalorder %s51, %s67
      %p69 = scmp.eq.s32.totalorder %s22, 0
      %p70 = por %p68, %p69
      %s71 = ssub.s32 %s25, %s34
      %s72 = ssub.s32 %s24, %s38
      %s73 = sor.u32 %s71, %s72
      %p74 = scmp.eq.s32.totalorder %s73, 0
      %s76 = sadd.s32 %s75, 1
      %s77 = scalar_select %p74, %s75, %s76
      %p80 = pneg %p74
      %p81 = scmp.eq.s32.totalorder %s16, 1
      %p82 = por %p80, %p81
      %p83 = scmp.ne.s32.totalorder %s75, %s78
      %p84 = scmp.eq.s32.totalorder %s16, 0
      %p85 = por %p83, %p84
      %p86 = scmp.ne.s32.totalorder %s75, %s78
      %p87 = scmp.eq.s32.totalorder %s21, 1
      %p88 = por %p86, %p87
      %p89 = scmp.ne.s32.totalorder %s78, %s79
      %p90 = scmp.eq.s32.totalorder %s21, 0
      %p91 = por %p89, %p90
      %p92 = scmp.ne.s32.totalorder %s78, %s79
      %p93 = scmp.eq.s32.totalorder %s22, 1
      %p94 = por %p92, %p93
      %p96 = scmp.ne.s32.totalorder %s79, %s95
      %p97 = scmp.eq.s32.totalorder %s22, 0
      %p98 = por %p96, %p97
      %s99 = ssub.s32 %s24, %s38
      %p100 = scmp.eq.s32.totalorder %s99, 0
      %s102 = sadd.s32 %s101, 1
      %s103 = scalar_select %p100, %s101, %s102
      %p106 = pneg %p100
      %p107 = scmp.eq.s32.totalorder %s16, 1
      %p108 = por %p106, %p107
      %p109 = scmp.ne.s32.totalorder %s101, %s104
      %p110 = scmp.eq.s32.totalorder %s16, 0
      %p111 = por %p109, %p110
      %p112 = scmp.ne.s32.totalorder %s101, %s104
      %p113 = scmp.eq.s32.totalorder %s21, 1
      %p114 = por %p112, %p113
      %p115 = scmp.ne.s32.totalorder %s104, %s105
      %p116 = scmp.eq.s32.totalorder %s21, 0
      %p117 = por %p115, %p116
      %p118 = scmp.ne.s32.totalorder %s104, %s105
      %p119 = scmp.eq.s32.totalorder %s22, 1
      %p120 = por %p118, %p119
      %p122 = scmp.ne.s32.totalorder %s105, %s121
      %p123 = scmp.eq.s32.totalorder %s22, 0
      %p124 = por %p122, %p123
      %s125 = ssub.s32 %s23, %s42
      %s126 = ssub.s32 %s24, %s38
      %s127 = sor.u32 %s125, %s126
      %p128 = scmp.eq.s32.totalorder %s127, 0
      %s130 = sadd.s32 %s129, 1
      %s131 = scalar_select %p128, %s129, %s130
      %p134 = pneg %p128
      %p135 = scmp.eq.s32.totalorder %s16, 1
      %p136 = por %p134, %p135
      %p137 = scmp.ne.s32.totalorder %s129, %s132
      %p138 = scmp.eq.s32.totalorder %s16, 0
      %p139 = por %p137, %p138
      %p140 = scmp.ne.s32.totalorder %s129, %s132
      %p141 = scmp.eq.s32.totalorder %s21, 1
      %p142 = por %p140, %p141
      %p143 = scmp.ne.s32.totalorder %s132, %s133
      %p144 = scmp.eq.s32.totalorder %s21, 0
      %p145 = por %p143, %p144
      %p146 = scmp.ne.s32.totalorder %s132, %s133
      %p147 = scmp.eq.s32.totalorder %s22, 1
      %p148 = por %p146, %p147
      %p150 = scmp.ne.s32.totalorder %s133, %s149
      %p151 = scmp.eq.s32.totalorder %s22, 0
      %p152 = por %p150, %p151
      %p153 = scmp.le.s32.totalorder 1, %s16
      %p154 = scmp.lt.s32.totalorder %s16, 3
      %p155 = pnand %p153, %p154
      %p156 = pneg %p155
      // Predicated region
      $region9: #{tpu_custom_call.1} parent=5 // pred_check
        _
      $region10: #{tpu_custom_call.1} parent=5 // pred_check_branch
        %158 = sbr.rel (%p155) target = $region12
      $region11: #{tpu_custom_call.1} parent=5 // pred_region
        %s159 = ssub.s32 %s16, 1
        // Predicated region
        $region13: #{tpu_custom_call.1} parent=11 // pred_check
          %p160 = pneg %p117
        $region14: #{tpu_custom_call.1} parent=11 // pred_check_branch
          %162 = sbr.rel (%p160) target = $region16
        $region15: #{tpu_custom_call.1} parent=11 // pred_region
          %p163 = scmp.lt.s32.totalorder %s27, 0
          %s164 = scalar_select %p163, %s27, 0
          %s165 = scalar_lea.vmem %s2, %s164
        $region16: #{tpu_custom_call.1} parent=11 // pred_fallthru
          _
      $region12: #{tpu_custom_call.1} parent=5 // pred_fallthru
        _
      %p166 = scmp.lt.s32.totalorder %s16, 2
      // Predicated region
      $region17: #{tpu_custom_call.1} parent=5 // pred_check
        %p167 = pneg %p166
      $region18: #{tpu_custom_call.1} parent=5 // pred_check_branch
        %169 = sbr.rel (%p167) target = $region20
      $region19: #{tpu_custom_call.1} parent=5 // pred_region
        // Predicated region
        $region21: #{tpu_custom_call.1} parent=19 // pred_check
          %p170 = pneg %p57
        $region22: #{tpu_custom_call.1} parent=19 // pred_check_branch
          %172 = sbr.rel (%p170) target = $region24
        $region23: #{tpu_custom_call.1} parent=19 // pred_region
          %s173 = sand.u32 %s47, 1
          %s174 = scalar_lea.sflag [#allocation4], %s173
          %s175 = sand.u32 %s47, 1
          %s176 = smul.addr %s175, 8
          %s177 = scalar_lea.vmem [#allocation3], %s176
          %s178 = smul.u32 2, %s23
          %s180 = ssub.s32 128, 128
          %181 = vsyncadd %s174, %s180
          %s182 = smul.addr %s178, 2
          %s183 = sadd.s32 %s25, %s182
          %s184 = smul.addr %s183, 64
          %s185 = scalar_lea.hbm %s0, %s184
          %s186 = sshll.u32 %s177, 4
          %s187 = int_to_ptr.vmem [resolvable:$true] %s186
          %192 = dma.hbm_to_vmem [thread:$0]  %s185, 128, %s187, %s174, 128, 64, 4
        $region24: #{tpu_custom_call.1} parent=19 // pred_fallthru
          _
        // Predicated region
        $region25: #{tpu_custom_call.1} parent=19 // pred_check
          %p193 = pneg %p85
        $region26: #{tpu_custom_call.1} parent=19 // pred_check_branch
          %195 = sbr.rel (%p193) target = $region28
        $region27: #{tpu_custom_call.1} parent=19 // pred_region
          %s196 = sand.u32 %s75, 1
          %s197 = scalar_lea.sflag [#allocation7], %s196
          %s198 = sand.u32 %s75, 1
          %s199 = smul.addr %s198, 64
          %s200 = scalar_lea.vmem [#allocation6], %s199
          %s201 = smul.u32 16, %s25
          %s203 = ssub.s32 1024, 1024
          %204 = vsyncadd %s197, %s203
          %s205 = sadd.s32 %s24, %s201
          %s206 = smul.addr %s205, 64
          %s207 = scalar_lea.hbm %s1, %s206
          %s208 = sshll.u32 %s200, 4
          %s209 = int_to_ptr.vmem [resolvable:$true] %s208
          %214 = dma.hbm_to_vmem [thread:$0]  %s207, 1024, %s209, %s197, 64, 64, 4
        $region28: #{tpu_custom_call.1} parent=19 // pred_fallthru
          _
      $region20: #{tpu_custom_call.1} parent=5 // pred_fallthru
        _
      %p215 = scmp.le.s32.totalorder 1, %s16
      %p216 = scmp.lt.s32.totalorder %s16, 3
      %p217 = pnand %p215, %p216
      %p218 = pneg %p217
      // Predicated region
      $region29: #{tpu_custom_call.1} parent=5 // pred_check
        _
      $region30: #{tpu_custom_call.1} parent=5 // pred_check_branch
        %220 = sbr.rel (%p217) target = $region32
      $region31: #{tpu_custom_call.1} parent=5 // pred_region
        %s221 = ssub.s32 %s16, 1
        %s222 = sand.u32 %s50, 1
        %s223 = scalar_lea.sflag [#allocation4], %s222
        %s224 = sand.u32 %s50, 1
        %s225 = smul.addr %s224, 8
        %s226 = scalar_lea.vmem [#allocation3], %s225
        // Predicated region
        $region33: #{tpu_custom_call.1} parent=31 // pred_check
          %p227 = pneg %p63
        $region34: #{tpu_custom_call.1} parent=31 // pred_check_branch
          %229 = sbr.rel (%p227) target = $region36
        $region35: #{tpu_custom_call.1} parent=31 // pred_region
          %230 = dma.done %s223, 128
        $region36: #{tpu_custom_call.1} parent=31 // pred_fallthru
          _
        %s231 = sand.u32 %s78, 1
        %s232 = scalar_lea.sflag [#allocation7], %s231
        %s233 = sand.u32 %s78, 1
        %s234 = smul.addr %s233, 64
        %s235 = scalar_lea.vmem [#allocation6], %s234
        // Predicated region
        $region37: #{tpu_custom_call.1} parent=31 // pred_check
          %p236 = pneg %p91
        $region38: #{tpu_custom_call.1} parent=31 // pred_check_branch
          %238 = sbr.rel (%p236) target = $region40
        $region39: #{tpu_custom_call.1} parent=31 // pred_region
          %239 = dma.done %s232, 1024
        $region40: #{tpu_custom_call.1} parent=31 // pred_fallthru
          _
        %s240 = sand.u32 %s50, 1
        %s241 = scalar_lea.sflag [#allocation4], %s240
        %s242 = sand.u32 %s50, 1
        %s243 = smul.addr %s242, 8
        %s244 = scalar_lea.vmem [#allocation3], %s243
        %p245 = pneg %p63
        %p246 = pneg %p60
        %s247 = sand.u32 %s78, 1
        %s248 = scalar_lea.sflag [#allocation7], %s247
        %s249 = sand.u32 %s78, 1
        %s250 = smul.addr %s249, 64
        %s251 = scalar_lea.vmem [#allocation6], %s250
        %p252 = pneg %p91
        %p253 = pneg %p88
        %p254 = scmp.lt.s32.totalorder %s27, 0
        %s255 = scalar_select %p254, %s27, 0
        %s256 = scalar_lea.vmem %s2, %s255
        %p257 = pneg %p117
        %p258 = pneg %p114
        %p259 = pneg %p145
        %p260 = pneg %p142
        %s261 = smul.u32 2, %s26
        %s262 = smul.u32 16, %s28
        %p263 = scmp.lt.s32.totalorder %s27, 0
        %s264 = scalar_select %p263, %s27, 0
        %s265 = scalar_lea.vmem %s2, %s264
        %s266 = smul.u32 2, %s26
        %p268 = scmp.eq.s32.totalorder %s28, 0
        // Predicated region
        $region41: #{tpu_custom_call.1} parent=31 // pred_check
          %p269 = pneg %p268
        $region42: #{tpu_custom_call.1} parent=31 // pred_check_branch
          %271 = sbr.rel (%p269) target = $region44
        $region43: #{tpu_custom_call.1} parent=31 // pred_region
          %272 = vst [vmem:[#allocation2] sm:$0xff] 0.0
          %273 = vst [vmem:[#allocation2 + $0x8] sm:$0xff] 0.0
        $region44: #{tpu_custom_call.1} parent=31 // pred_fallthru
          _
        %v274 = vld [vmem:[#allocation2] sm:$0xff]
        %v275 = vld [vmem:[#allocation2 + $0x8] sm:$0xff]
        %v276 = vld [vmem:[%s226] sm:$0xf]
        %v277 = vld [vmem:[%s226 + $0x4] sm:$0xf]
        %v278 = vld [vmem:[%s235] sm:$0xf]
        %v279 = vld [vmem:[%s235 + $0x4] sm:$0xf]
        %v280 = vld [vmem:[%s235 + $0x8] sm:$0xf]
        %v281 = vld [vmem:[%s235 + $0xc] sm:$0xf]
        %v282 = vld [vmem:[%s235 + $0x10] sm:$0xf]
        %v283 = vld [vmem:[%s235 + $0x14] sm:$0xf]
        %v284 = vld [vmem:[%s235 + $0x18] sm:$0xf]
        %v285 = vld [vmem:[%s235 + $0x1c] sm:$0xf]
        %v286 = vld [vmem:[%s235 + $0x20] sm:$0xf]
        %v287 = vld [vmem:[%s235 + $0x24] sm:$0xf]
        %v288 = vld [vmem:[%s235 + $0x28] sm:$0xf]
        %v289 = vld [vmem:[%s235 + $0x2c] sm:$0xf]
        %v290 = vld [vmem:[%s235 + $0x30] sm:$0xf]
        %v291 = vld [vmem:[%s235 + $0x34] sm:$0xf]
        %v292 = vld [vmem:[%s235 + $0x38] sm:$0xf]
        %v293 = vld [vmem:[%s235 + $0x3c] sm:$0xf]
        %v296 = vunpack.c.l.b16 %v276
        %v297 = vunpack.c.l.b16 %v277
        %v298 = vpack.c.b16 %v297, %v296
        %v316 = vunpack.c.l.b16 %v278
        %v317 = vunpack.c.l.b16 %v279
        %v318 = vunpack.c.l.b16 %v280
        %v319 = vunpack.c.l.b16 %v281
        %v320 = vunpack.c.l.b16 %v282
        %v321 = vunpack.c.l.b16 %v283
        %v322 = vunpack.c.l.b16 %v284
        %v323 = vunpack.c.l.b16 %v285
        %v324 = vunpack.c.l.b16 %v286
        %v325 = vunpack.c.l.b16 %v287
        %v326 = vunpack.c.l.b16 %v288
        %v327 = vunpack.c.l.b16 %v289
        %v328 = vunpack.c.l.b16 %v290
        %v329 = vunpack.c.l.b16 %v291
        %v330 = vunpack.c.l.b16 %v292
        %v331 = vunpack.c.l.b16 %v293
        %v332 = vpack.c.b16 %v317, %v316
        %v333 = vpack.c.b16 %v319, %v318
        %v334 = vpack.c.b16 %v321, %v320
        %v335 = vpack.c.b16 %v323, %v322
        %v336 = vpack.c.b16 %v325, %v324
        %v337 = vpack.c.b16 %v327, %v326
        %v338 = vpack.c.b16 %v329, %v328
        %v339 = vpack.c.b16 %v331, %v330
        %348 = vmatprep.subr.bf16.mxu0 0
        %349 = vmatpush1.bf16.msra.mxu0 %v332
        %350 = vmatprep.subr.bf16.mxu0 0
        %351 = vmatpush1.bf16.msra.mxu0 %v333
        %352 = vmatprep.subr.bf16.mxu0 0
        %353 = vmatpush1.bf16.msra.mxu0 %v334
        %354 = vmatprep.subr.bf16.mxu0 0
        %355 = vmatpush1.bf16.msra.mxu0 %v335
        %356 = vmatprep.subr.bf16.mxu0 0
        %357 = vmatpush1.bf16.msra.mxu0 %v336
        %358 = vmatprep.subr.bf16.mxu0 0
        %359 = vmatpush1.bf16.msra.mxu0 %v337
        %360 = vmatprep.subr.bf16.mxu0 0
        %361 = vmatpush1.bf16.msra.mxu0 %v338
        %362 = vmatprep.subr.bf16.mxu0 0
        %363 = vmatpush1.bf16.msra.mxu0 %v339
        %364 = vmatprep.subr.bf16.mxu0 0
        %365 = vmatpush1.bf16.msra.mxu0 0
        %366 = vmatprep.subr.bf16.mxu0 0
        %367 = vmatpush1.bf16.msra.mxu0 0
        %368 = vmatprep.subr.bf16.mxu0 0
        %369 = vmatpush1.bf16.msra.mxu0 0
        %370 = vmatprep.subr.bf16.mxu0 0
        %371 = vmatpush1.bf16.msra.mxu0 0
        %372 = vmatprep.subr.bf16.mxu0 0
        %373 = vmatpush1.bf16.msra.mxu0 0
        %374 = vmatprep.subr.bf16.mxu0 0
        %375 = vmatpush1.bf16.msra.mxu0 0
        %376 = vmatprep.subr.bf16.mxu0 0
        %377 = vmatpush1.bf16.msra.mxu0 0
        %378 = vmatprep.subr.bf16.mxu0 0
        %379 = vmatpush1.bf16.msra.mxu0 0
        %380 = vmatprep.mubr.bf16.mxu0 0
        %381 = vmatmul.mubr.bf16.gmra.mrb[0].mxu0 %v298
        %v382 = vpop.f32.mrb[0].mxu0
        %v383 = vadd.f32 0.0, %v382
        %v384 = vpop.f32.mrb[0].mxu0
        %v385 = vpop.f32.mrb[0].mxu0
        %v386 = vadd.f32 0.0, %v385
        %v387 = vpop.f32.mrb[0].mxu0
        %388 = vdwg.mxu0
        %v389 = vadd.f32 %v274, %v383
        %v390 = vadd.f32 %v275, %v386
        %391 = vst [vmem:[#allocation2] sm:$0xff] %v389
        %392 = vst [vmem:[#allocation2 + $0x8] sm:$0xff] %v390
        %p393 = scmp.eq.s32.totalorder %s28, 1
        // Predicated region
        $region45: #{tpu_custom_call.1} parent=31 // pred_check
          %p394 = pneg %p393
        $region46: #{tpu_custom_call.1} parent=31 // pred_check_branch
          %396 = sbr.rel (%p394) target = $region48
        $region47: #{tpu_custom_call.1} parent=31 // pred_region
          %v397 = vld [vmem:[#allocation2] sm:$0xff]
          %v398 = vld [vmem:[#allocation2 + $0x8] sm:$0xff]
          %v399 = vld [vmem:[%s265] sm:$0x1]
          %v401 = vlaneseq
          %v402 = vshrl.u32 %v401, 7
          %v403 = vsub.s32 0, %v402
          %v404 = vrot.slane %v399, %v403
          %v406 = vadd.f32 %v397, %v404
          %v407 = vadd.f32 %v398, %v404
          %408 = vst [vmem:[#allocation8] sm:$0xff] %v406
          %409 = vst [vmem:[#allocation8 + $0x8] sm:$0xff] %v407
        $region48: #{tpu_custom_call.1} parent=31 // pred_fallthru
          _
        // Predicated region
        $region49: #{tpu_custom_call.1} parent=31 // pred_check
          %p410 = pneg %p142
        $region50: #{tpu_custom_call.1} parent=31 // pred_check_branch
          %412 = sbr.rel (%p410) target = $region52
        $region51: #{tpu_custom_call.1} parent=31 // pred_region
          %s413 = smul.u32 2, %s26
          %s415 = ssub.s32 256, 256
          %416 = vsyncadd [#allocation5], %s415
          %s417 = sadd.s32 %s27, %s413
          %s418 = smul.addr %s417, 128
          %s419 = scalar_lea.hbm %s3, %s418
          %s420 = sshll.u32 [#allocation8], 4
          %s421 = int_to_ptr.vmem [resolvable:$true] %s420
          %426 = dma.vmem_to_hbm [thread:$0]  %s421, 256, %s419, [#allocation5], 128, 128, 8
        $region52: #{tpu_custom_call.1} parent=31 // pred_fallthru
          _
        // Predicated region
        $region53: #{tpu_custom_call.1} parent=31 // pred_check
          %p427 = pneg %p142
        $region54: #{tpu_custom_call.1} parent=31 // pred_check_branch
          %429 = sbr.rel (%p427) target = $region56
        $region55: #{tpu_custom_call.1} parent=31 // pred_region
          %430 = dma.done [#allocation5], 256
        $region56: #{tpu_custom_call.1} parent=31 // pred_fallthru
          _
      $region32: #{tpu_custom_call.1} parent=5 // pred_fallthru
        _
      %p431 = scmp.le.s32.totalorder 2, %s16
      // Predicated region
      $region57: #{tpu_custom_call.1} parent=5 // pred_check
        %p432 = pneg %p431
      $region58: #{tpu_custom_call.1} parent=5 // pred_check_branch
        %434 = sbr.rel (%p432) target = $region60
      $region59: #{tpu_custom_call.1} parent=5 // pred_region
        %s435 = ssub.s32 %s16, 2
      $region60: #{tpu_custom_call.1} parent=5 // pred_fallthru
        _
    $region6: #{tpu_custom_call.1} parent=1 // loop_footer
      %s20 = sadd.s32 1, %s16
    $region7: #{tpu_custom_call.1} parent=1 // loop_footer_branch
      %15 = sbr.rel target = $region3
    $region8: #{tpu_custom_call.1} parent=1 // loop_exit
      _
    %436 = vsyncpa [#allocation4], 1
    %s437 = scalar_lea.sflag [#allocation4], 1
    %438 = vsyncpa %s437, 1
    %439 = vsyncpa [#allocation7], 1
    %s440 = scalar_lea.sflag [#allocation7], 1
    %441 = vsyncpa %s440, 1
    %442 = vsyncpa [#allocation5], 1
    %s443 = scalar_lea.sflag [#allocation5], 1
    %444 = vsyncpa %s443, 1

</llo_original>
